<compile_context>
chip_gen: v5e
topology: v5e:2x2
jax: 0.10.0
libtpu: 0.0.40
codegen_flags: <defaults>
</compile_context>

<pallas_src>
import functools

import jax
import jax.numpy as jnp
import numpy as np
from jax import lax
from jax.experimental import pallas as pl
from jax.experimental.pallas import tpu as pltpu

# --- module hyper-parameters (YoloLoss.__init__ defaults) -------------------
S = 7
B = 2
C = 20
LAMBDA_COORD = 5.0
LAMBDA_NOOBJ = 0.5
D = 5 * B + C          # 30 channels
SS = S * S             # 49 cells per image


def _pick_tiling(batch):
    """Returns (images per grid tile, images per compute slab, num grid tiles)."""
    if batch < 8:
        # Single tile covering the whole array (block == full dims, so the
        # (8,128) divisibility rule is satisfied via the full-dim escape).
        return batch, batch, 1
    # Tiles are a multiple of 4 images => tile_rows = 4k*30 is a multiple of 8.
    quads = -(-batch // 4)
    quads_per_tile = min(16, max(1, -(-quads // 2)))   # >=2 tiles, <=64 imgs/tile
    tile_i = 4 * quads_per_tile
    slab_i = 8 if tile_i % 8 == 0 else 4               # always divides tile_i
    num_tiles = -(-batch // tile_i)
    return tile_i, slab_i, num_tiles


def yolo_loss_kernel(p_ref, t_ref, out_ref, *, batch, tile_i, slab_i, padded,
                     nd, nb, nc, s, lambda_coord, lambda_noobj):
    """p_ref/t_ref: [tile_i*nd, SS] VMEM blocks (row j*nd + c = image j, chan c).
    out_ref: [1, tile_i, SS] per-cell weighted loss (0 on padded images)."""
    ss = p_ref.shape[-1]
    gs = 1.0 / s
    n_slabs = tile_i // slab_i

    def slab_loss(j0):
        base = j0 * nd
        p_cache, t_cache = {}, {}

        def _ld(ref, cache, c):
            # Strided sublane gather: channel c of the slab_i consecutive
            # images of this slab -> one dense [slab_i, SS] slab (<= 1 vreg).
            if c not in cache:
                cache[c] = ref[pl.ds(base + c, slab_i, stride=nd), :].astype(
                    jnp.float32)
            return cache[c]

        pr = lambda c: _ld(p_ref, p_cache, c)
        tr = lambda c: _ld(t_ref, t_cache, c)

        def d2(c):
            d = pr(c) - tr(c)
            return d * d

        t_conf = tr(4)
        if padded:
            # Last tile may run past `batch`; mask garbage (OOB) images.
            img = (pl.program_id(0) * tile_i + j0
                   + lax.broadcasted_iota(jnp.int32, (slab_i, ss), 0))
            valid = img < batch
            obj = (t_conf > 0.0) & valid
            noobj = (t_conf == 0.0) & valid
        else:
            obj = t_conf > 0.0
            noobj = t_conf == 0.0

        # ---- no-object confidence term (all B conf channels) ----
        noobj_sq = d2(4)
        for b in range(1, nb):
            noobj_sq = noobj_sq + d2(4 + 5 * b)

        # ---- class term (object cells only) ----
        class_sq = d2(5 * nb)
        for c in range(5 * nb + 1, 5 * nb + nc):
            class_sq = class_sq + d2(c)

        cell_loss = (lambda_noobj * jnp.where(noobj, noobj_sq, 0.0)
                     + jnp.where(obj, class_sq, 0.0))

        # ---- target box (first slot only) in xyxy, same algebra as reference ----
        t_x1 = tr(0) * gs - 0.5 * tr(2)
        t_y1 = tr(1) * gs - 0.5 * tr(3)
        t_x2 = tr(0) * gs + 0.5 * tr(2)
        t_y2 = tr(1) * gs + 0.5 * tr(3)
        t_area = (t_x2 - t_x1) * (t_y2 - t_y1)

        # ---- pass 1: per predicted box: IoU, coord loss, conf prediction ----
        ious, box_sq, p_conf = [], [], []
        for b in range(nb):
            r = 5 * b
            p_x1 = pr(r) * gs - 0.5 * pr(r + 2)
            p_y1 = pr(r + 1) * gs - 0.5 * pr(r + 3)
            p_x2 = pr(r) * gs + 0.5 * pr(r + 2)
            p_y2 = pr(r + 1) * gs + 0.5 * pr(r + 3)
            iw = jnp.maximum(jnp.minimum(p_x2, t_x2) - jnp.maximum(p_x1, t_x1),
                             0.0)
            ih = jnp.maximum(jnp.minimum(p_y2, t_y2) - jnp.maximum(p_y1, t_y1),
                             0.0)
            inter = iw * ih
            p_area = (p_x2 - p_x1) * (p_y2 - p_y1)
            union = p_area + t_area - inter + 1e-12   # eps guards zero-area boxes
            inv = pl.reciprocal(union, approx=True)   # EUP slot
            inv = inv * (2.0 - union * inv)           # one Newton step -> ~f32 exact
            ious.append(inter * inv)

            xy_sq = d2(r) + d2(r + 1)
            # sqrt computed unconditionally; NaNs on non-responsible lanes are
            # discarded by the jnp.where(resp, ...) below.
            # TODO(synk): raw negative predicted w/h NaNs exactly as in the
            # PyTorch reference; no clamp added to preserve semantics.
            wh_sq = ((jnp.sqrt(pr(r + 2)) - jnp.sqrt(tr(r + 2))) ** 2
                     + (jnp.sqrt(pr(r + 3)) - jnp.sqrt(tr(r + 3))) ** 2)
            box_sq.append(lambda_coord * (xy_sq + wh_sq))
            p_conf.append(pr(r + 4))

        best_iou = ious[0]
        for b in range(1, nb):
            best_iou = jnp.maximum(best_iou, ious[b])

        # ---- pass 2: responsible box = first arg-max (torch.max semantics) ----
        taken = jnp.zeros((slab_i, ss), dtype=jnp.bool_)
        for b in range(nb):
            is_best = (ious[b] >= best_iou) & jnp.logical_not(taken)
            taken = taken | is_best
            resp = obj & is_best
            dconf = p_conf[b] - best_iou
            cell_loss = cell_loss + jnp.where(resp, box_sq[b] + dconf * dconf,
                                              0.0)
        return cell_loss

    # Static slab loop (<= 8 iters); each slab is <= 8 images so every live
    # per-channel value is one vreg, and each iteration ends with its store.
    for si in range(n_slabs):
        j0 = si * slab_i
        out_ref[0, pl.ds(j0, slab_i), :] = slab_loss(j0)


def yolo_loss(pred_nchw, target_nchw):
    """pred/target: [batch, 5*B+C, S, S] (NCHW, same as the nn.Module)."""
    batch, d, sh, sw = pred_nchw.shape
    assert d == D and sh == S and sw == S
    ss = sh * sw

    # Free reshape (collapses contiguous dims) -- no extra HBM pass, unlike the
    # previous transpose+pad wrapper.  Row j*d + c = image j, channel c.
    p2 = pred_nchw.reshape(batch * d, ss)
    t2 = target_nchw.reshape(batch * d, ss)

    tile_i, slab_i, num_tiles = _pick_tiling(batch)
    padded = (num_tiles * tile_i) != batch
    rows_per_tile = tile_i * d

    kernel = functools.partial(
        yolo_loss_kernel, batch=batch, tile_i=tile_i, slab_i=slab_i,
        padded=padded, nd=d, nb=B, nc=C, s=S,
        lambda_coord=LAMBDA_COORD, lambda_noobj=LAMBDA_NOOBJ)

    per_cell = pl.pallas_call(
        kernel,
        out_shape=jax.ShapeDtypeStruct((num_tiles, tile_i, ss), jnp.float32),
        grid=(num_tiles,),
        in_specs=[pl.BlockSpec((rows_per_tile, ss), lambda i: (i, 0)),
                  pl.BlockSpec((rows_per_tile, ss), lambda i: (i, 0))],
        out_specs=pl.BlockSpec((1, tile_i, ss), lambda i: (i, 0, 0)),
        compiler_params=pltpu.CompilerParams(
            dimension_semantics=("parallel",),     # tiles independent -> 2 TCs on v7x
            vmem_limit_bytes=32 * 1024 * 1024),
    )(p2, t2)

    # Tiny per-cell partials (padded images contribute exact 0) -> total loss.
    return jnp.sum(per_cell) / batch


# ---------------- pure-numpy reference mirroring the PyTorch code ------------
def yolo_loss_ref(pred_nchw, target_nchw):
    pred = np.transpose(np.asarray(pred_nchw, dtype=np.float64), (0, 2, 3, 1))
    tgt = np.transpose(np.asarray(target_nchw, dtype=np.float64), (0, 2, 3, 1))
    bs = pred.shape[0]
    gs = 1.0 / S
    predf = pred.reshape(-1, D)
    tgtf = tgt.reshape(-1, D)
    obj = tgtf[:, 4] > 0
    noobj = tgtf[:, 4] == 0
    conf_idx = [4 + 5 * b for b in range(B)]
    loss_conf_noobj = np.sum((predf[noobj][:, conf_idx]
                              - tgtf[noobj][:, conf_idx]) ** 2)
    coord_p = predf[obj]
    coord_t = tgtf[obj]
    loss_class = np.sum((coord_p[:, 5 * B:] - coord_t[:, 5 * B:]) ** 2)
    bbox_p = coord_p[:, :5 * B].reshape(-1, 5)
    bbox_t = coord_t[:, :5 * B].reshape(-1, 5)
    loss_xy = loss_wh = loss_conf = 0.0
    for i in range(0, bbox_p.shape[0], B):
        pb = bbox_p[i:i + B]
        p_xyxy = np.zeros((B, 4))
        p_xyxy[:, :2] = pb[:, :2] * gs - pb[:, 2:4] * 0.5
        p_xyxy[:, 2:4] = pb[:, :2] * gs + pb[:, 2:4] * 0.5
        tb = bbox_t[i].reshape(1, 5)
        t_xyxy = np.zeros((1, 4))
        t_xyxy[:, :2] = tb[:, :2] * gs - tb[:, 2:4] * 0.5
        t_xyxy[:, 2:4] = tb[:, :2] * gs + tb[:, 2:4] * 0.5
        lt = np.maximum(p_xyxy[:, None, :2], t_xyxy[None, :, :2])
        rb = np.minimum(p_xyxy[:, None, 2:], t_xyxy[None, :, 2:])
        wh = np.clip(rb - lt, 0.0, None)
        inter = wh[..., 0] * wh[..., 1]
        a1 = ((p_xyxy[:, 2] - p_xyxy[:, 0]) * (p_xyxy[:, 3] - p_xyxy[:, 1]))[:, None]
        a2 = ((t_xyxy[:, 2] - t_xyxy[:, 0]) * (t_xyxy[:, 3] - t_xyxy[:, 1]))[None, :]
        iou = inter / (a1 + a2 - inter)
        mi = int(iou.argmax(0)[0])
        max_iou = iou.max(0)[0]
        pr = bbox_p[i + mi]
        tr = bbox_t[i + mi]
        loss_xy += np.sum((pr[:2] - tr[:2]) ** 2)
        loss_wh += np.sum((np.sqrt(pr[2:4]) - np.sqrt(tr[2:4])) ** 2)
        loss_conf += (pr[4] - max_iou) ** 2
    loss = (LAMBDA_COORD * (loss_xy + loss_wh)
            + LAMBDA_NOOBJ * loss_conf_noobj + loss_conf + loss_class)
    return loss / bs


if __name__ == "__main__":
    batch = 2
    key = jax.random.PRNGKey(0)
    k1, k2, k3, k4, k5 = jax.random.split(key, 5)

    # predictions: NCHW [batch, 5B+C, S, S], squashed to (0,1) so wh-sqrt is defined
    pred = jax.nn.sigmoid(
        jax.random.normal(k1, (batch, D, S, S), dtype=jnp.float32))

    # targets: YOLOv1-style encoding, ~25% of cells hold an object
    obj_cells = (jax.random.uniform(k2, (batch, S, S)) < 0.25).astype(jnp.float32)
    xy = jax.random.uniform(k3, (batch, S, S, 2), dtype=jnp.float32)
    wh = jax.random.uniform(k4, (batch, S, S, 2), dtype=jnp.float32,
                            minval=0.1, maxval=0.9)
    cls = jax.nn.one_hot(jax.random.randint(k5, (batch, S, S), 0, C), C,
                         dtype=jnp.float32)
    box = jnp.concatenate([xy, wh, jnp.ones((batch, S, S, 1), jnp.float32)], -1)
    tgt_nhwc = jnp.concatenate([box, box, cls], axis=-1) * obj_cells[..., None]
    target = jnp.transpose(tgt_nhwc, (0, 3, 1, 2))  # NCHW

    loss = yolo_loss(pred, target)
    loss = jax.block_until_ready(loss)

    ref = yolo_loss_ref(pred, target)
    assert np.allclose(float(loss), float(ref), rtol=1e-3, atol=1e-3), (loss, ref)
    print("KERNEL_OK")
</pallas_src>

<mosaic_0001>
module attributes {stable_mosaic.version = 11 : i64} {
  func.func @yolo_loss_kernel(%arg0: i32, %arg1: memref<60x49xf32, #tpu.memory_space<vmem>>, %arg2: memref<60x49xf32, #tpu.memory_space<vmem>>, %arg3: memref<1x2x49xf32, #tpu.memory_space<vmem>>) attributes {dimension_semantics = [#tpu.dimension_semantics<parallel>], iteration_bounds = array<i64: 1>, scalar_prefetch = 0 : i64, scratch_operands = 0 : i64, tpu.core_type = #tpu.core_type<tc>, window_params = [{transform_indices = @transform_0, window_bounds = array<i64: 60, 49>}, {transform_indices = @transform_1, window_bounds = array<i64: 60, 49>}, {transform_indices = @transform_2, window_bounds = array<i64: 1, 2, 49>}]} {
    %c4 = arith.constant 4 : index
    %c0 = arith.constant 0 : index
    %0 = tpu.strided_load %arg2[%c4, %c0] {strides = array<i32: 30, 1>} : memref<60x49xf32, #tpu.memory_space<vmem>>, vector<2x49xf32>
    %cst = arith.constant 0.000000e+00 : f32
    %1 = vector.broadcast %cst : f32 to vector<2x49xf32>
    %2 = arith.cmpf ogt, %0, %1 : vector<2x49xf32>
    %cst_0 = arith.constant 0.000000e+00 : f32
    %3 = vector.broadcast %cst_0 : f32 to vector<2x49xf32>
    %4 = arith.cmpf oeq, %0, %3 : vector<2x49xf32>
    %c4_1 = arith.constant 4 : index
    %c0_2 = arith.constant 0 : index
    %5 = tpu.strided_load %arg1[%c4_1, %c0_2] {strides = array<i32: 30, 1>} : memref<60x49xf32, #tpu.memory_space<vmem>>, vector<2x49xf32>
    %6 = arith.subf %5, %0 : vector<2x49xf32>
    %7 = arith.mulf %6, %6 : vector<2x49xf32>
    %c9 = arith.constant 9 : index
    %c0_3 = arith.constant 0 : index
    %8 = tpu.strided_load %arg1[%c9, %c0_3] {strides = array<i32: 30, 1>} : memref<60x49xf32, #tpu.memory_space<vmem>>, vector<2x49xf32>
    %c9_4 = arith.constant 9 : index
    %c0_5 = arith.constant 0 : index
    %9 = tpu.strided_load %arg2[%c9_4, %c0_5] {strides = array<i32: 30, 1>} : memref<60x49xf32, #tpu.memory_space<vmem>>, vector<2x49xf32>
    %10 = arith.subf %8, %9 : vector<2x49xf32>
    %11 = arith.mulf %10, %10 : vector<2x49xf32>
    %12 = arith.addf %7, %11 : vector<2x49xf32>
    %c10 = arith.constant 10 : index
    %c0_6 = arith.constant 0 : index
    %13 = tpu.strided_load %arg1[%c10, %c0_6] {strides = array<i32: 30, 1>} : memref<60x49xf32, #tpu.memory_space<vmem>>, vector<2x49xf32>
    %c10_7 = arith.constant 10 : index
    %c0_8 = arith.constant 0 : index
    %14 = tpu.strided_load %arg2[%c10_7, %c0_8] {strides = array<i32: 30, 1>} : memref<60x49xf32, #tpu.memory_space<vmem>>, vector<2x49xf32>
    %15 = arith.subf %13, %14 : vector<2x49xf32>
    %16 = arith.mulf %15, %15 : vector<2x49xf32>
    %c11 = arith.constant 11 : index
    %c0_9 = arith.constant 0 : index
    %17 = tpu.strided_load %arg1[%c11, %c0_9] {strides = array<i32: 30, 1>} : memref<60x49xf32, #tpu.memory_space<vmem>>, vector<2x49xf32>
    %c11_10 = arith.constant 11 : index
    %c0_11 = arith.constant 0 : index
    %18 = tpu.strided_load %arg2[%c11_10, %c0_11] {strides = array<i32: 30, 1>} : memref<60x49xf32, #tpu.memory_space<vmem>>, vector<2x49xf32>
    %19 = arith.subf %17, %18 : vector<2x49xf32>
    %20 = arith.mulf %19, %19 : vector<2x49xf32>
    %21 = arith.addf %16, %20 : vector<2x49xf32>
    %c12 = arith.constant 12 : index
    %c0_12 = arith.constant 0 : index
    %22 = tpu.strided_load %arg1[%c12, %c0_12] {strides = array<i32: 30, 1>} : memref<60x49xf32, #tpu.memory_space<vmem>>, vector<2x49xf32>
    %c12_13 = arith.constant 12 : index
    %c0_14 = arith.constant 0 : index
    %23 = tpu.strided_load %arg2[%c12_13, %c0_14] {strides = array<i32: 30, 1>} : memref<60x49xf32, #tpu.memory_space<vmem>>, vector<2x49xf32>
    %24 = arith.subf %22, %23 : vector<2x49xf32>
    %25 = arith.mulf %24, %24 : vector<2x49xf32>
    %26 = arith.addf %21, %25 : vector<2x49xf32>
    %c13 = arith.constant 13 : index
    %c0_15 = arith.constant 0 : index
    %27 = tpu.strided_load %arg1[%c13, %c0_15] {strides = array<i32: 30, 1>} : memref<60x49xf32, #tpu.memory_space<vmem>>, vector<2x49xf32>
    %c13_16 = arith.constant 13 : index
    %c0_17 = arith.constant 0 : index
    %28 = tpu.strided_load %arg2[%c13_16, %c0_17] {strides = array<i32: 30, 1>} : memref<60x49xf32, #tpu.memory_space<vmem>>, vector<2x49xf32>
    %29 = arith.subf %27, %28 : vector<2x49xf32>
    %30 = arith.mulf %29, %29 : vector<2x49xf32>
    %31 = arith.addf %26, %30 : vector<2x49xf32>
    %c14 = arith.constant 14 : index
    %c0_18 = arith.constant 0 : index
    %32 = tpu.strided_load %arg1[%c14, %c0_18] {strides = array<i32: 30, 1>} : memref<60x49xf32, #tpu.memory_space<vmem>>, vector<2x49xf32>
    %c14_19 = arith.constant 14 : index
    %c0_20 = arith.constant 0 : index
    %33 = tpu.strided_load %arg2[%c14_19, %c0_20] {strides = array<i32: 30, 1>} : memref<60x49xf32, #tpu.memory_space<vmem>>, vector<2x49xf32>
    %34 = arith.subf %32, %33 : vector<2x49xf32>
    %35 = arith.mulf %34, %34 : vector<2x49xf32>
    %36 = arith.addf %31, %35 : vector<2x49xf32>
    %c15 = arith.constant 15 : index
    %c0_21 = arith.constant 0 : index
    %37 = tpu.strided_load %arg1[%c15, %c0_21] {strides = array<i32: 30, 1>} : memref<60x49xf32, #tpu.memory_space<vmem>>, vector<2x49xf32>
    %c15_22 = arith.constant 15 : index
    %c0_23 = arith.constant 0 : index
    %38 = tpu.strided_load %arg2[%c15_22, %c0_23] {strides = array<i32: 30, 1>} : memref<60x49xf32, #tpu.memory_space<vmem>>, vector<2x49xf32>
    %39 = arith.subf %37, %38 : vector<2x49xf32>
    %40 = arith.mulf %39, %39 : vector<2x49xf32>
    %41 = arith.addf %36, %40 : vector<2x49xf32>
    %c16 = arith.constant 16 : index
    %c0_24 = arith.constant 0 : index
    %42 = tpu.strided_load %arg1[%c16, %c0_24] {strides = array<i32: 30, 1>} : memref<60x49xf32, #tpu.memory_space<vmem>>, vector<2x49xf32>
    %c16_25 = arith.constant 16 : index
    %c0_26 = arith.constant 0 : index
    %43 = tpu.strided_load %arg2[%c16_25, %c0_26] {strides = array<i32: 30, 1>} : memref<60x49xf32, #tpu.memory_space<vmem>>, vector<2x49xf32>
    %44 = arith.subf %42, %43 : vector<2x49xf32>
    %45 = arith.mulf %44, %44 : vector<2x49xf32>
    %46 = arith.addf %41, %45 : vector<2x49xf32>
    %c17 = arith.constant 17 : index
    %c0_27 = arith.constant 0 : index
    %47 = tpu.strided_load %arg1[%c17, %c0_27] {strides = array<i32: 30, 1>} : memref<60x49xf32, #tpu.memory_space<vmem>>, vector<2x49xf32>
    %c17_28 = arith.constant 17 : index
    %c0_29 = arith.constant 0 : index
    %48 = tpu.strided_load %arg2[%c17_28, %c0_29] {strides = array<i32: 30, 1>} : memref<60x49xf32, #tpu.memory_space<vmem>>, vector<2x49xf32>
    %49 = arith.subf %47, %48 : vector<2x49xf32>
    %50 = arith.mulf %49, %49 : vector<2x49xf32>
    %51 = arith.addf %46, %50 : vector<2x49xf32>
    %c18 = arith.constant 18 : index
    %c0_30 = arith.constant 0 : index
    %52 = tpu.strided_load %arg1[%c18, %c0_30] {strides = array<i32: 30, 1>} : memref<60x49xf32, #tpu.memory_space<vmem>>, vector<2x49xf32>
    %c18_31 = arith.constant 18 : index
    %c0_32 = arith.constant 0 : index
    %53 = tpu.strided_load %arg2[%c18_31, %c0_32] {strides = array<i32: 30, 1>} : memref<60x49xf32, #tpu.memory_space<vmem>>, vector<2x49xf32>
    %54 = arith.subf %52, %53 : vector<2x49xf32>
    %55 = arith.mulf %54, %54 : vector<2x49xf32>
    %56 = arith.addf %51, %55 : vector<2x49xf32>
    %c19 = arith.constant 19 : index
    %c0_33 = arith.constant 0 : index
    %57 = tpu.strided_load %arg1[%c19, %c0_33] {strides = array<i32: 30, 1>} : memref<60x49xf32, #tpu.memory_space<vmem>>, vector<2x49xf32>
    %c19_34 = arith.constant 19 : index
    %c0_35 = arith.constant 0 : index
    %58 = tpu.strided_load %arg2[%c19_34, %c0_35] {strides = array<i32: 30, 1>} : memref<60x49xf32, #tpu.memory_space<vmem>>, vector<2x49xf32>
    %59 = arith.subf %57, %58 : vector<2x49xf32>
    %60 = arith.mulf %59, %59 : vector<2x49xf32>
    %61 = arith.addf %56, %60 : vector<2x49xf32>
    %c20 = arith.constant 20 : index
    %c0_36 = arith.constant 0 : index
    %62 = tpu.strided_load %arg1[%c20, %c0_36] {strides = array<i32: 30, 1>} : memref<60x49xf32, #tpu.memory_space<vmem>>, vector<2x49xf32>
    %c20_37 = arith.constant 20 : index
    %c0_38 = arith.constant 0 : index
    %63 = tpu.strided_load %arg2[%c20_37, %c0_38] {strides = array<i32: 30, 1>} : memref<60x49xf32, #tpu.memory_space<vmem>>, vector<2x49xf32>
    %64 = arith.subf %62, %63 : vector<2x49xf32>
    %65 = arith.mulf %64, %64 : vector<2x49xf32>
    %66 = arith.addf %61, %65 : vector<2x49xf32>
    %c21 = arith.constant 21 : index
    %c0_39 = arith.constant 0 : index
    %67 = tpu.strided_load %arg1[%c21, %c0_39] {strides = array<i32: 30, 1>} : memref<60x49xf32, #tpu.memory_space<vmem>>, vector<2x49xf32>
    %c21_40 = arith.constant 21 : index
    %c0_41 = arith.constant 0 : index
    %68 = tpu.strided_load %arg2[%c21_40, %c0_41] {strides = array<i32: 30, 1>} : memref<60x49xf32, #tpu.memory_space<vmem>>, vector<2x49xf32>
    %69 = arith.subf %67, %68 : vector<2x49xf32>
    %70 = arith.mulf %69, %69 : vector<2x49xf32>
    %71 = arith.addf %66, %70 : vector<2x49xf32>
    %c22 = arith.constant 22 : index
    %c0_42 = arith.constant 0 : index
    %72 = tpu.strided_load %arg1[%c22, %c0_42] {strides = array<i32: 30, 1>} : memref<60x49xf32, #tpu.memory_space<vmem>>, vector<2x49xf32>
    %c22_43 = arith.constant 22 : index
    %c0_44 = arith.constant 0 : index
    %73 = tpu.strided_load %arg2[%c22_43, %c0_44] {strides = array<i32: 30, 1>} : memref<60x49xf32, #tpu.memory_space<vmem>>, vector<2x49xf32>
    %74 = arith.subf %72, %73 : vector<2x49xf32>
    %75 = arith.mulf %74, %74 : vector<2x49xf32>
    %76 = arith.addf %71, %75 : vector<2x49xf32>
    %c23 = arith.constant 23 : index
    %c0_45 = arith.constant 0 : index
    %77 = tpu.strided_load %arg1[%c23, %c0_45] {strides = array<i32: 30, 1>} : memref<60x49xf32, #tpu.memory_space<vmem>>, vector<2x49xf32>
    %c23_46 = arith.constant 23 : index
    %c0_47 = arith.constant 0 : index
    %78 = tpu.strided_load %arg2[%c23_46, %c0_47] {strides = array<i32: 30, 1>} : memref<60x49xf32, #tpu.memory_space<vmem>>, vector<2x49xf32>
    %79 = arith.subf %77, %78 : vector<2x49xf32>
    %80 = arith.mulf %79, %79 : vector<2x49xf32>
    %81 = arith.addf %76, %80 : vector<2x49xf32>
    %c24 = arith.constant 24 : index
    %c0_48 = arith.constant 0 : index
    %82 = tpu.strided_load %arg1[%c24, %c0_48] {strides = array<i32: 30, 1>} : memref<60x49xf32, #tpu.memory_space<vmem>>, vector<2x49xf32>
    %c24_49 = arith.constant 24 : index
    %c0_50 = arith.constant 0 : index
    %83 = tpu.strided_load %arg2[%c24_49, %c0_50] {strides = array<i32: 30, 1>} : memref<60x49xf32, #tpu.memory_space<vmem>>, vector<2x49xf32>
    %84 = arith.subf %82, %83 : vector<2x49xf32>
    %85 = arith.mulf %84, %84 : vector<2x49xf32>
    %86 = arith.addf %81, %85 : vector<2x49xf32>
    %c25 = arith.constant 25 : index
    %c0_51 = arith.constant 0 : index
    %87 = tpu.strided_load %arg1[%c25, %c0_51] {strides = array<i32: 30, 1>} : memref<60x49xf32, #tpu.memory_space<vmem>>, vector<2x49xf32>
    %c25_52 = arith.constant 25 : index
    %c0_53 = arith.constant 0 : index
    %88 = tpu.strided_load %arg2[%c25_52, %c0_53] {strides = array<i32: 30, 1>} : memref<60x49xf32, #tpu.memory_space<vmem>>, vector<2x49xf32>
    %89 = arith.subf %87, %88 : vector<2x49xf32>
    %90 = arith.mulf %89, %89 : vector<2x49xf32>
    %91 = arith.addf %86, %90 : vector<2x49xf32>
    %c26 = arith.constant 26 : index
    %c0_54 = arith.constant 0 : index
    %92 = tpu.strided_load %arg1[%c26, %c0_54] {strides = array<i32: 30, 1>} : memref<60x49xf32, #tpu.memory_space<vmem>>, vector<2x49xf32>
    %c26_55 = arith.constant 26 : index
    %c0_56 = arith.constant 0 : index
    %93 = tpu.strided_load %arg2[%c26_55, %c0_56] {strides = array<i32: 30, 1>} : memref<60x49xf32, #tpu.memory_space<vmem>>, vector<2x49xf32>
    %94 = arith.subf %92, %93 : vector<2x49xf32>
    %95 = arith.mulf %94, %94 : vector<2x49xf32>
    %96 = arith.addf %91, %95 : vector<2x49xf32>
    %c27 = arith.constant 27 : index
    %c0_57 = arith.constant 0 : index
    %97 = tpu.strided_load %arg1[%c27, %c0_57] {strides = array<i32: 30, 1>} : memref<60x49xf32, #tpu.memory_space<vmem>>, vector<2x49xf32>
    %c27_58 = arith.constant 27 : index
    %c0_59 = arith.constant 0 : index
    %98 = tpu.strided_load %arg2[%c27_58, %c0_59] {strides = array<i32: 30, 1>} : memref<60x49xf32, #tpu.memory_space<vmem>>, vector<2x49xf32>
    %99 = arith.subf %97, %98 : vector<2x49xf32>
    %100 = arith.mulf %99, %99 : vector<2x49xf32>
    %101 = arith.addf %96, %100 : vector<2x49xf32>
    %c28 = arith.constant 28 : index
    %c0_60 = arith.constant 0 : index
    %102 = tpu.strided_load %arg1[%c28, %c0_60] {strides = array<i32: 30, 1>} : memref<60x49xf32, #tpu.memory_space<vmem>>, vector<2x49xf32>
    %c28_61 = arith.constant 28 : index
    %c0_62 = arith.constant 0 : index
    %103 = tpu.strided_load %arg2[%c28_61, %c0_62] {strides = array<i32: 30, 1>} : memref<60x49xf32, #tpu.memory_space<vmem>>, vector<2x49xf32>
    %104 = arith.subf %102, %103 : vector<2x49xf32>
    %105 = arith.mulf %104, %104 : vector<2x49xf32>
    %106 = arith.addf %101, %105 : vector<2x49xf32>
    %c29 = arith.constant 29 : index
    %c0_63 = arith.constant 0 : index
    %107 = tpu.strided_load %arg1[%c29, %c0_63] {strides = array<i32: 30, 1>} : memref<60x49xf32, #tpu.memory_space<vmem>>, vector<2x49xf32>
    %c29_64 = arith.constant 29 : index
    %c0_65 = arith.constant 0 : index
    %108 = tpu.strided_load %arg2[%c29_64, %c0_65] {strides = array<i32: 30, 1>} : memref<60x49xf32, #tpu.memory_space<vmem>>, vector<2x49xf32>
    %109 = arith.subf %107, %108 : vector<2x49xf32>
    %110 = arith.mulf %109, %109 : vector<2x49xf32>
    %111 = arith.addf %106, %110 : vector<2x49xf32>
    %cst_66 = arith.constant 0.000000e+00 : f32
    %112 = vector.broadcast %cst_66 : f32 to vector<2x49xf32>
    %113 = arith.select %4, %12, %112 : vector<2x49xi1>, vector<2x49xf32>
    %cst_67 = arith.constant 5.000000e-01 : f32
    %114 = vector.broadcast %cst_67 : f32 to vector<2x49xf32>
    %115 = arith.mulf %114, %113 : vector<2x49xf32>
    %cst_68 = arith.constant 0.000000e+00 : f32
    %116 = vector.broadcast %cst_68 : f32 to vector<2x49xf32>
    %117 = arith.select %2, %111, %116 : vector<2x49xi1>, vector<2x49xf32>
    %118 = arith.addf %115, %117 : vector<2x49xf32>
    %c0_69 = arith.constant 0 : index
    %c0_70 = arith.constant 0 : index
    %119 = tpu.strided_load %arg2[%c0_69, %c0_70] {strides = array<i32: 30, 1>} : memref<60x49xf32, #tpu.memory_space<vmem>>, vector<2x49xf32>
    %cst_71 = arith.constant 0.142857149 : f32
    %120 = vector.broadcast %cst_71 : f32 to vector<2x49xf32>
    %121 = arith.mulf %119, %120 : vector<2x49xf32>
    %c2 = arith.constant 2 : index
    %c0_72 = arith.constant 0 : index
    %122 = tpu.strided_load %arg2[%c2, %c0_72] {strides = array<i32: 30, 1>} : memref<60x49xf32, #tpu.memory_space<vmem>>, vector<2x49xf32>
    %cst_73 = arith.constant 5.000000e-01 : f32
    %123 = vector.broadcast %cst_73 : f32 to vector<2x49xf32>
    %124 = arith.mulf %123, %122 : vector<2x49xf32>
    %125 = arith.subf %121, %124 : vector<2x49xf32>
    %c1 = arith.constant 1 : index
    %c0_74 = arith.constant 0 : index
    %126 = tpu.strided_load %arg2[%c1, %c0_74] {strides = array<i32: 30, 1>} : memref<60x49xf32, #tpu.memory_space<vmem>>, vector<2x49xf32>
    %cst_75 = arith.constant 0.142857149 : f32
    %127 = vector.broadcast %cst_75 : f32 to vector<2x49xf32>
    %128 = arith.mulf %126, %127 : vector<2x49xf32>
    %c3 = arith.constant 3 : index
    %c0_76 = arith.constant 0 : index
    %129 = tpu.strided_load %arg2[%c3, %c0_76] {strides = array<i32: 30, 1>} : memref<60x49xf32, #tpu.memory_space<vmem>>, vector<2x49xf32>
    %cst_77 = arith.constant 5.000000e-01 : f32
    %130 = vector.broadcast %cst_77 : f32 to vector<2x49xf32>
    %131 = arith.mulf %130, %129 : vector<2x49xf32>
    %132 = arith.subf %128, %131 : vector<2x49xf32>
    %cst_78 = arith.constant 0.142857149 : f32
    %133 = vector.broadcast %cst_78 : f32 to vector<2x49xf32>
    %134 = arith.mulf %119, %133 : vector<2x49xf32>
    %cst_79 = arith.constant 5.000000e-01 : f32
    %135 = vector.broadcast %cst_79 : f32 to vector<2x49xf32>
    %136 = arith.mulf %135, %122 : vector<2x49xf32>
    %137 = arith.addf %134, %136 : vector<2x49xf32>
    %cst_80 = arith.constant 0.142857149 : f32
    %138 = vector.broadcast %cst_80 : f32 to vector<2x49xf32>
    %139 = arith.mulf %126, %138 : vector<2x49xf32>
    %cst_81 = arith.constant 5.000000e-01 : f32
    %140 = vector.broadcast %cst_81 : f32 to vector<2x49xf32>
    %141 = arith.mulf %140, %129 : vector<2x49xf32>
    %142 = arith.addf %139, %141 : vector<2x49xf32>
    %143 = arith.subf %137, %125 : vector<2x49xf32>
    %144 = arith.subf %142, %132 : vector<2x49xf32>
    %145 = arith.mulf %143, %144 : vector<2x49xf32>
    %c0_82 = arith.constant 0 : index
    %c0_83 = arith.constant 0 : index
    %146 = tpu.strided_load %arg1[%c0_82, %c0_83] {strides = array<i32: 30, 1>} : memref<60x49xf32, #tpu.memory_space<vmem>>, vector<2x49xf32>
    %cst_84 = arith.constant 0.142857149 : f32
    %147 = vector.broadcast %cst_84 : f32 to vector<2x49xf32>
    %148 = arith.mulf %146, %147 : vector<2x49xf32>
    %c2_85 = arith.constant 2 : index
    %c0_86 = arith.constant 0 : index
    %149 = tpu.strided_load %arg1[%c2_85, %c0_86] {strides = array<i32: 30, 1>} : memref<60x49xf32, #tpu.memory_space<vmem>>, vector<2x49xf32>
    %cst_87 = arith.constant 5.000000e-01 : f32
    %150 = vector.broadcast %cst_87 : f32 to vector<2x49xf32>
    %151 = arith.mulf %150, %149 : vector<2x49xf32>
    %152 = arith.subf %148, %151 : vector<2x49xf32>
    %c1_88 = arith.constant 1 : index
    %c0_89 = arith.constant 0 : index
    %153 = tpu.strided_load %arg1[%c1_88, %c0_89] {strides = array<i32: 30, 1>} : memref<60x49xf32, #tpu.memory_space<vmem>>, vector<2x49xf32>
    %cst_90 = arith.constant 0.142857149 : f32
    %154 = vector.broadcast %cst_90 : f32 to vector<2x49xf32>
    %155 = arith.mulf %153, %154 : vector<2x49xf32>
    %c3_91 = arith.constant 3 : index
    %c0_92 = arith.constant 0 : index
    %156 = tpu.strided_load %arg1[%c3_91, %c0_92] {strides = array<i32: 30, 1>} : memref<60x49xf32, #tpu.memory_space<vmem>>, vector<2x49xf32>
    %cst_93 = arith.constant 5.000000e-01 : f32
    %157 = vector.broadcast %cst_93 : f32 to vector<2x49xf32>
    %158 = arith.mulf %157, %156 : vector<2x49xf32>
    %159 = arith.subf %155, %158 : vector<2x49xf32>
    %cst_94 = arith.constant 0.142857149 : f32
    %160 = vector.broadcast %cst_94 : f32 to vector<2x49xf32>
    %161 = arith.mulf %146, %160 : vector<2x49xf32>
    %cst_95 = arith.constant 5.000000e-01 : f32
    %162 = vector.broadcast %cst_95 : f32 to vector<2x49xf32>
    %163 = arith.mulf %162, %149 : vector<2x49xf32>
    %164 = arith.addf %161, %163 : vector<2x49xf32>
    %cst_96 = arith.constant 0.142857149 : f32
    %165 = vector.broadcast %cst_96 : f32 to vector<2x49xf32>
    %166 = arith.mulf %153, %165 : vector<2x49xf32>
    %cst_97 = arith.constant 5.000000e-01 : f32
    %167 = vector.broadcast %cst_97 : f32 to vector<2x49xf32>
    %168 = arith.mulf %167, %156 : vector<2x49xf32>
    %169 = arith.addf %166, %168 : vector<2x49xf32>
    %170 = arith.minimumf %164, %137 : vector<2x49xf32>
    %171 = arith.maximumf %152, %125 : vector<2x49xf32>
    %172 = arith.subf %170, %171 : vector<2x49xf32>
    %cst_98 = arith.constant 0.000000e+00 : f32
    %173 = vector.broadcast %cst_98 : f32 to vector<2x49xf32>
    %174 = arith.maximumf %172, %173 : vector<2x49xf32>
    %175 = arith.minimumf %169, %142 : vector<2x49xf32>
    %176 = arith.maximumf %159, %132 : vector<2x49xf32>
    %177 = arith.subf %175, %176 : vector<2x49xf32>
    %cst_99 = arith.constant 0.000000e+00 : f32
    %178 = vector.broadcast %cst_99 : f32 to vector<2x49xf32>
    %179 = arith.maximumf %177, %178 : vector<2x49xf32>
    %180 = arith.mulf %174, %179 : vector<2x49xf32>
    %181 = arith.subf %164, %152 : vector<2x49xf32>
    %182 = arith.subf %169, %159 : vector<2x49xf32>
    %183 = arith.mulf %181, %182 : vector<2x49xf32>
    %184 = arith.addf %183, %145 : vector<2x49xf32>
    %185 = arith.subf %184, %180 : vector<2x49xf32>
    %cst_100 = arith.constant 9.99999996E-13 : f32
    %186 = vector.broadcast %cst_100 : f32 to vector<2x49xf32>
    %187 = arith.addf %185, %186 : vector<2x49xf32>
    %188 = tpu.reciprocal %187 {approx = true} : vector<2x49xf32> -> vector<2x49xf32>
    %189 = arith.mulf %187, %188 : vector<2x49xf32>
    %cst_101 = arith.constant 2.000000e+00 : f32
    %190 = vector.broadcast %cst_101 : f32 to vector<2x49xf32>
    %191 = arith.subf %190, %189 : vector<2x49xf32>
    %192 = arith.mulf %188, %191 : vector<2x49xf32>
    %193 = arith.mulf %180, %192 : vector<2x49xf32>
    %194 = arith.subf %146, %119 : vector<2x49xf32>
    %195 = arith.mulf %194, %194 : vector<2x49xf32>
    %196 = arith.subf %153, %126 : vector<2x49xf32>
    %197 = arith.mulf %196, %196 : vector<2x49xf32>
    %198 = arith.addf %195, %197 : vector<2x49xf32>
    %199 = math.sqrt %149 : vector<2x49xf32>
    %200 = math.sqrt %122 : vector<2x49xf32>
    %201 = arith.subf %199, %200 : vector<2x49xf32>
    %202 = arith.mulf %201, %201 : vector<2x49xf32>
    %203 = math.sqrt %156 : vector<2x49xf32>
    %204 = math.sqrt %129 : vector<2x49xf32>
    %205 = arith.subf %203, %204 : vector<2x49xf32>
    %206 = arith.mulf %205, %205 : vector<2x49xf32>
    %207 = arith.addf %202, %206 : vector<2x49xf32>
    %208 = arith.addf %198, %207 : vector<2x49xf32>
    %cst_102 = arith.constant 5.000000e+00 : f32
    %209 = vector.broadcast %cst_102 : f32 to vector<2x49xf32>
    %210 = arith.mulf %209, %208 : vector<2x49xf32>
    %c5 = arith.constant 5 : index
    %c0_103 = arith.constant 0 : index
    %211 = tpu.strided_load %arg1[%c5, %c0_103] {strides = array<i32: 30, 1>} : memref<60x49xf32, #tpu.memory_space<vmem>>, vector<2x49xf32>
    %cst_104 = arith.constant 0.142857149 : f32
    %212 = vector.broadcast %cst_104 : f32 to vector<2x49xf32>
    %213 = arith.mulf %211, %212 : vector<2x49xf32>
    %c7 = arith.constant 7 : index
    %c0_105 = arith.constant 0 : index
    %214 = tpu.strided_load %arg1[%c7, %c0_105] {strides = array<i32: 30, 1>} : memref<60x49xf32, #tpu.memory_space<vmem>>, vector<2x49xf32>
    %cst_106 = arith.constant 5.000000e-01 : f32
    %215 = vector.broadcast %cst_106 : f32 to vector<2x49xf32>
    %216 = arith.mulf %215, %214 : vector<2x49xf32>
    %217 = arith.subf %213, %216 : vector<2x49xf32>
    %c6 = arith.constant 6 : index
    %c0_107 = arith.constant 0 : index
    %218 = tpu.strided_load %arg1[%c6, %c0_107] {strides = array<i32: 30, 1>} : memref<60x49xf32, #tpu.memory_space<vmem>>, vector<2x49xf32>
    %cst_108 = arith.constant 0.142857149 : f32
    %219 = vector.broadcast %cst_108 : f32 to vector<2x49xf32>
    %220 = arith.mulf %218, %219 : vector<2x49xf32>
    %c8 = arith.constant 8 : index
    %c0_109 = arith.constant 0 : index
    %221 = tpu.strided_load %arg1[%c8, %c0_109] {strides = array<i32: 30, 1>} : memref<60x49xf32, #tpu.memory_space<vmem>>, vector<2x49xf32>
    %cst_110 = arith.constant 5.000000e-01 : f32
    %222 = vector.broadcast %cst_110 : f32 to vector<2x49xf32>
    %223 = arith.mulf %222, %221 : vector<2x49xf32>
    %224 = arith.subf %220, %223 : vector<2x49xf32>
    %cst_111 = arith.constant 0.142857149 : f32
    %225 = vector.broadcast %cst_111 : f32 to vector<2x49xf32>
    %226 = arith.mulf %211, %225 : vector<2x49xf32>
    %cst_112 = arith.constant 5.000000e-01 : f32
    %227 = vector.broadcast %cst_112 : f32 to vector<2x49xf32>
    %228 = arith.mulf %227, %214 : vector<2x49xf32>
    %229 = arith.addf %226, %228 : vector<2x49xf32>
    %cst_113 = arith.constant 0.142857149 : f32
    %230 = vector.broadcast %cst_113 : f32 to vector<2x49xf32>
    %231 = arith.mulf %218, %230 : vector<2x49xf32>
    %cst_114 = arith.constant 5.000000e-01 : f32
    %232 = vector.broadcast %cst_114 : f32 to vector<2x49xf32>
    %233 = arith.mulf %232, %221 : vector<2x49xf32>
    %234 = arith.addf %231, %233 : vector<2x49xf32>
    %235 = arith.minimumf %229, %137 : vector<2x49xf32>
    %236 = arith.maximumf %217, %125 : vector<2x49xf32>
    %237 = arith.subf %235, %236 : vector<2x49xf32>
    %cst_115 = arith.constant 0.000000e+00 : f32
    %238 = vector.broadcast %cst_115 : f32 to vector<2x49xf32>
    %239 = arith.maximumf %237, %238 : vector<2x49xf32>
    %240 = arith.minimumf %234, %142 : vector<2x49xf32>
    %241 = arith.maximumf %224, %132 : vector<2x49xf32>
    %242 = arith.subf %240, %241 : vector<2x49xf32>
    %cst_116 = arith.constant 0.000000e+00 : f32
    %243 = vector.broadcast %cst_116 : f32 to vector<2x49xf32>
    %244 = arith.maximumf %242, %243 : vector<2x49xf32>
    %245 = arith.mulf %239, %244 : vector<2x49xf32>
    %246 = arith.subf %229, %217 : vector<2x49xf32>
    %247 = arith.subf %234, %224 : vector<2x49xf32>
    %248 = arith.mulf %246, %247 : vector<2x49xf32>
    %249 = arith.addf %248, %145 : vector<2x49xf32>
    %250 = arith.subf %249, %245 : vector<2x49xf32>
    %cst_117 = arith.constant 9.99999996E-13 : f32
    %251 = vector.broadcast %cst_117 : f32 to vector<2x49xf32>
    %252 = arith.addf %250, %251 : vector<2x49xf32>
    %253 = tpu.reciprocal %252 {approx = true} : vector<2x49xf32> -> vector<2x49xf32>
    %254 = arith.mulf %252, %253 : vector<2x49xf32>
    %cst_118 = arith.constant 2.000000e+00 : f32
    %255 = vector.broadcast %cst_118 : f32 to vector<2x49xf32>
    %256 = arith.subf %255, %254 : vector<2x49xf32>
    %257 = arith.mulf %253, %256 : vector<2x49xf32>
    %258 = arith.mulf %245, %257 : vector<2x49xf32>
    %c5_119 = arith.constant 5 : index
    %c0_120 = arith.constant 0 : index
    %259 = tpu.strided_load %arg2[%c5_119, %c0_120] {strides = array<i32: 30, 1>} : memref<60x49xf32, #tpu.memory_space<vmem>>, vector<2x49xf32>
    %260 = arith.subf %211, %259 : vector<2x49xf32>
    %261 = arith.mulf %260, %260 : vector<2x49xf32>
    %c6_121 = arith.constant 6 : index
    %c0_122 = arith.constant 0 : index
    %262 = tpu.strided_load %arg2[%c6_121, %c0_122] {strides = array<i32: 30, 1>} : memref<60x49xf32, #tpu.memory_space<vmem>>, vector<2x49xf32>
    %263 = arith.subf %218, %262 : vector<2x49xf32>
    %264 = arith.mulf %263, %263 : vector<2x49xf32>
    %265 = arith.addf %261, %264 : vector<2x49xf32>
    %266 = math.sqrt %214 : vector<2x49xf32>
    %c7_123 = arith.constant 7 : index
    %c0_124 = arith.constant 0 : index
    %267 = tpu.strided_load %arg2[%c7_123, %c0_124] {strides = array<i32: 30, 1>} : memref<60x49xf32, #tpu.memory_space<vmem>>, vector<2x49xf32>
    %268 = math.sqrt %267 : vector<2x49xf32>
    %269 = arith.subf %266, %268 : vector<2x49xf32>
    %270 = arith.mulf %269, %269 : vector<2x49xf32>
    %271 = math.sqrt %221 : vector<2x49xf32>
    %c8_125 = arith.constant 8 : index
    %c0_126 = arith.constant 0 : index
    %272 = tpu.strided_load %arg2[%c8_125, %c0_126] {strides = array<i32: 30, 1>} : memref<60x49xf32, #tpu.memory_space<vmem>>, vector<2x49xf32>
    %273 = math.sqrt %272 : vector<2x49xf32>
    %274 = arith.subf %271, %273 : vector<2x49xf32>
    %275 = arith.mulf %274, %274 : vector<2x49xf32>
    %276 = arith.addf %270, %275 : vector<2x49xf32>
    %277 = arith.addf %265, %276 : vector<2x49xf32>
    %cst_127 = arith.constant 5.000000e+00 : f32
    %278 = vector.broadcast %cst_127 : f32 to vector<2x49xf32>
    %279 = arith.mulf %278, %277 : vector<2x49xf32>
    %280 = arith.maximumf %193, %258 : vector<2x49xf32>
    %false = arith.constant false
    %281 = vector.broadcast %false : i1 to vector<2x49xi1>
    %282 = arith.cmpf oge, %193, %280 : vector<2x49xf32>
    %cst_128 = arith.constant dense<true> : vector<2x49xi1>
    %283 = arith.xori %281, %cst_128 : vector<2x49xi1>
    %284 = arith.andi %282, %283 : vector<2x49xi1>
    %285 = arith.ori %281, %284 : vector<2x49xi1>
    %286 = arith.andi %2, %284 : vector<2x49xi1>
    %287 = arith.subf %5, %280 : vector<2x49xf32>
    %288 = arith.mulf %287, %287 : vector<2x49xf32>
    %289 = arith.addf %210, %288 : vector<2x49xf32>
    %cst_129 = arith.constant 0.000000e+00 : f32
    %290 = vector.broadcast %cst_129 : f32 to vector<2x49xf32>
    %291 = arith.select %286, %289, %290 : vector<2x49xi1>, vector<2x49xf32>
    %292 = arith.addf %118, %291 : vector<2x49xf32>
    %293 = arith.cmpf oge, %258, %280 : vector<2x49xf32>
    %cst_130 = arith.constant dense<true> : vector<2x49xi1>
    %294 = arith.xori %285, %cst_130 : vector<2x49xi1>
    %295 = arith.andi %293, %294 : vector<2x49xi1>
    %296 = arith.andi %2, %295 : vector<2x49xi1>
    %297 = arith.subf %8, %280 : vector<2x49xf32>
    %298 = arith.mulf %297, %297 : vector<2x49xf32>
    %299 = arith.addf %279, %298 : vector<2x49xf32>
    %cst_131 = arith.constant 0.000000e+00 : f32
    %300 = vector.broadcast %cst_131 : f32 to vector<2x49xf32>
    %301 = arith.select %296, %299, %300 : vector<2x49xi1>, vector<2x49xf32>
    %302 = arith.addf %292, %301 : vector<2x49xf32>
    %c0_132 = arith.constant 0 : index
    %c0_133 = arith.constant 0 : index
    %c0_134 = arith.constant 0 : index
    %303 = vector.load %arg3[%c0_132, %c0_133, %c0_134] : memref<1x2x49xf32, #tpu.memory_space<vmem>>, vector<1x2x49xf32>
    %304 = vector.shape_cast %303 : vector<1x2x49xf32> to vector<2x49xf32>
    %305 = vector.shape_cast %302 : vector<2x49xf32> to vector<1x2x49xf32>
    tpu.vector_store %arg3[%c0_132, %c0_133, %c0_134], %305 {strides = array<i32>} : memref<1x2x49xf32, #tpu.memory_space<vmem>>, vector<1x2x49xf32>,
    return
  }
  func.func @transform_0(%arg0: i32) -> (i32, i32) {
    %c0_i32 = arith.constant 0 : i32
    %c0_i32_0 = arith.constant 0 : i32
    return %arg0, %c0_i32 : i32, i32
  }
  func.func @transform_1(%arg0: i32) -> (i32, i32) {
    %c0_i32 = arith.constant 0 : i32
    %c0_i32_0 = arith.constant 0 : i32
    return %arg0, %c0_i32 : i32, i32
  }
  func.func @transform_2(%arg0: i32) -> (i32, i32, i32) {
    %c0_i32 = arith.constant 0 : i32
    %c0_i32_0 = arith.constant 0 : i32
    %c0_i32_1 = arith.constant 0 : i32
    return %arg0, %c0_i32, %c0_i32_0 : i32, i32, i32
  }
}

</mosaic_0001>

<llo_original>
// kernel: tpu_custom_call.1
$region0: #{tpu_custom_call.1}
  #allocation0 [shape = 'u32[]', space=smem, size = 0x4, offset = 0x4, fixed_abs, tag = 'smem constant byte address 0x4 - core index']
  #allocation1 [shape = 'u32[72,128]{1,0:T(1,128)}', space=vmem, size = 0x9000, scoped, tag = 'internal scratch']
  %s0 = inlined_call_operand.vmem [shape: f32[60,49], index: 0, kind: input, shape index: {}]
  %s1 = inlined_call_operand.vmem [shape: f32[60,49], index: 1, kind: input, shape index: {}]
  %s2 = inlined_call_operand.hbm [shape: f32[1,2,49], index: 2, kind: output, shape index: {}]
  %s3 = sld [smem:[#allocation0]]
  $region18: #{tpu_custom_call.1} parent=0
    _
  %s5 = ssub.s32 1, %s3
  %s6 = scalar_select 0, %s5, %s3
  $region1: #{tpu_custom_call.1} parent=0
    #allocation2 [shape = 'u8[1024]{0}', space=vmem, size = 0x400, scoped, tag = 'output window, operand 0, single buffered']
    #allocation3 [shape = 's32[1]{0}', space=sflag, size = 0x4, scoped, tag = 'scoped memory for tpu_custom_call.1']
    %7 = vsyncpa [#allocation3], 0
    // Predicated region
    $region2: #{tpu_custom_call.1} parent=1 // pred_check
      _
    $region3: #{tpu_custom_call.1} parent=1 // pred_check_branch
      %9 = sbr.rel (0) target = $region5
    $region4: #{tpu_custom_call.1} parent=1 // pred_region
      _
    $region5: #{tpu_custom_call.1} parent=1 // pred_fallthru
      _
    // Predicated region
    $region6: #{tpu_custom_call.1} parent=1 // pred_check
      _
    $region7: #{tpu_custom_call.1} parent=1 // pred_check_branch
      %11 = sbr.rel (0) target = $region9
    $region8: #{tpu_custom_call.1} parent=1 // pred_region
      _
    $region9: #{tpu_custom_call.1} parent=1 // pred_fallthru
      _
    %s12 = scalar_lea.vmem %s1, 4
    %v13 = vld [vmem:[%s12] ss:$30 sm:$0x3]
    %vm14 = vcmp.gt.f32.partialorder %v13, 0.0
    %vm15 = vcmp.eq.f32.partialorder %v13, 0.0
    %s16 = scalar_lea.vmem %s0, 4
    %v17 = vld [vmem:[%s16] ss:$30 sm:$0x3]
    %v18 = vsub.f32 %v17, %v13
    %v19 = vmul.f32 %v18, %v18
    %s20 = scalar_lea.vmem %s0, 9
    %v21 = vld [vmem:[%s20] ss:$30 sm:$0x3]
    %s22 = scalar_lea.vmem %s1, 9
    %v23 = vld [vmem:[%s22] ss:$30 sm:$0x3]
    %v24 = vsub.f32 %v21, %v23
    %v25 = vmul.f32 %v24, %v24
    %v26 = vadd.f32 %v19, %v25
    %s27 = scalar_lea.vmem %s0, 10
    %v28 = vld [vmem:[%s27] ss:$30 sm:$0x3]
    %s29 = scalar_lea.vmem %s1, 10
    %v30 = vld [vmem:[%s29] ss:$30 sm:$0x3]
    %v31 = vsub.f32 %v28, %v30
    %v32 = vmul.f32 %v31, %v31
    %s33 = scalar_lea.vmem %s0, 11
    %v34 = vld [vmem:[%s33] ss:$30 sm:$0x3]
    %s35 = scalar_lea.vmem %s1, 11
    %v36 = vld [vmem:[%s35] ss:$30 sm:$0x3]
    %v37 = vsub.f32 %v34, %v36
    %v38 = vmul.f32 %v37, %v37
    %v39 = vadd.f32 %v32, %v38
    %s40 = scalar_lea.vmem %s0, 12
    %v41 = vld [vmem:[%s40] ss:$30 sm:$0x3]
    %s42 = scalar_lea.vmem %s1, 12
    %v43 = vld [vmem:[%s42] ss:$30 sm:$0x3]
    %v44 = vsub.f32 %v41, %v43
    %v45 = vmul.f32 %v44, %v44
    %v46 = vadd.f32 %v39, %v45
    %s47 = scalar_lea.vmem %s0, 13
    %v48 = vld [vmem:[%s47] ss:$30 sm:$0x3]
    %s49 = scalar_lea.vmem %s1, 13
    %v50 = vld [vmem:[%s49] ss:$30 sm:$0x3]
    %v51 = vsub.f32 %v48, %v50
    %v52 = vmul.f32 %v51, %v51
    %v53 = vadd.f32 %v46, %v52
    %s54 = scalar_lea.vmem %s0, 14
    %v55 = vld [vmem:[%s54] ss:$30 sm:$0x3]
    %s56 = scalar_lea.vmem %s1, 14
    %v57 = vld [vmem:[%s56] ss:$30 sm:$0x3]
    %v58 = vsub.f32 %v55, %v57
    %v59 = vmul.f32 %v58, %v58
    %v60 = vadd.f32 %v53, %v59
    %s61 = scalar_lea.vmem %s0, 15
    %v62 = vld [vmem:[%s61] ss:$30 sm:$0x3]
    %s63 = scalar_lea.vmem %s1, 15
    %v64 = vld [vmem:[%s63] ss:$30 sm:$0x3]
    %v65 = vsub.f32 %v62, %v64
    %v66 = vmul.f32 %v65, %v65
    %v67 = vadd.f32 %v60, %v66
    %s68 = scalar_lea.vmem %s0, 16
    %v69 = vld [vmem:[%s68] ss:$30 sm:$0x3]
    %s70 = scalar_lea.vmem %s1, 16
    %v71 = vld [vmem:[%s70] ss:$30 sm:$0x3]
    %v72 = vsub.f32 %v69, %v71
    %v73 = vmul.f32 %v72, %v72
    %v74 = vadd.f32 %v67, %v73
    %s75 = scalar_lea.vmem %s0, 17
    %v76 = vld [vmem:[%s75] ss:$30 sm:$0x3]
    %s77 = scalar_lea.vmem %s1, 17
    %v78 = vld [vmem:[%s77] ss:$30 sm:$0x3]
    %v79 = vsub.f32 %v76, %v78
    %v80 = vmul.f32 %v79, %v79
    %v81 = vadd.f32 %v74, %v80
    %s82 = scalar_lea.vmem %s0, 18
    %v83 = vld [vmem:[%s82] ss:$30 sm:$0x3]
    %s84 = scalar_lea.vmem %s1, 18
    %v85 = vld [vmem:[%s84] ss:$30 sm:$0x3]
    %v86 = vsub.f32 %v83, %v85
    %v87 = vmul.f32 %v86, %v86
    %v88 = vadd.f32 %v81, %v87
    %s89 = scalar_lea.vmem %s0, 19
    %v90 = vld [vmem:[%s89] ss:$30 sm:$0x3]
    %s91 = scalar_lea.vmem %s1, 19
    %v92 = vld [vmem:[%s91] ss:$30 sm:$0x3]
    %v93 = vsub.f32 %v90, %v92
    %v94 = vmul.f32 %v93, %v93
    %v95 = vadd.f32 %v88, %v94
    %s96 = scalar_lea.vmem %s0, 20
    %v97 = vld [vmem:[%s96] ss:$30 sm:$0x3]
    %s98 = scalar_lea.vmem %s1, 20
    %v99 = vld [vmem:[%s98] ss:$30 sm:$0x3]
    %v100 = vsub.f32 %v97, %v99
    %v101 = vmul.f32 %v100, %v100
    %v102 = vadd.f32 %v95, %v101
    %s103 = scalar_lea.vmem %s0, 21
    %v104 = vld [vmem:[%s103] ss:$30 sm:$0x3]
    %s105 = scalar_lea.vmem %s1, 21
    %v106 = vld [vmem:[%s105] ss:$30 sm:$0x3]
    %v107 = vsub.f32 %v104, %v106
    %v108 = vmul.f32 %v107, %v107
    %v109 = vadd.f32 %v102, %v108
    %s110 = scalar_lea.vmem %s0, 22
    %v111 = vld [vmem:[%s110] ss:$30 sm:$0x3]
    %s112 = scalar_lea.vmem %s1, 22
    %v113 = vld [vmem:[%s112] ss:$30 sm:$0x3]
    %v114 = vsub.f32 %v111, %v113
    %v115 = vmul.f32 %v114, %v114
    %v116 = vadd.f32 %v109, %v115
    %s117 = scalar_lea.vmem %s0, 23
    %v118 = vld [vmem:[%s117] ss:$30 sm:$0x3]
    %s119 = scalar_lea.vmem %s1, 23
    %v120 = vld [vmem:[%s119] ss:$30 sm:$0x3]
    %v121 = vsub.f32 %v118, %v120
    %v122 = vmul.f32 %v121, %v121
    %v123 = vadd.f32 %v116, %v122
    %s124 = scalar_lea.vmem %s0, 24
    %v125 = vld [vmem:[%s124] ss:$30 sm:$0x3]
    %s126 = scalar_lea.vmem %s1, 24
    %v127 = vld [vmem:[%s126] ss:$30 sm:$0x3]
    %v128 = vsub.f32 %v125, %v127
    %v129 = vmul.f32 %v128, %v128
    %v130 = vadd.f32 %v123, %v129
    %s131 = scalar_lea.vmem %s0, 25
    %v132 = vld [vmem:[%s131] ss:$30 sm:$0x3]
    %s133 = scalar_lea.vmem %s1, 25
    %v134 = vld [vmem:[%s133] ss:$30 sm:$0x3]
    %v135 = vsub.f32 %v132, %v134
    %v136 = vmul.f32 %v135, %v135
    %v137 = vadd.f32 %v130, %v136
    %s138 = scalar_lea.vmem %s0, 26
    %v139 = vld [vmem:[%s138] ss:$30 sm:$0x3]
    %s140 = scalar_lea.vmem %s1, 26
    %v141 = vld [vmem:[%s140] ss:$30 sm:$0x3]
    %v142 = vsub.f32 %v139, %v141
    %v143 = vmul.f32 %v142, %v142
    %v144 = vadd.f32 %v137, %v143
    %s145 = scalar_lea.vmem %s0, 27
    %v146 = vld [vmem:[%s145] ss:$30 sm:$0x3]
    %s147 = scalar_lea.vmem %s1, 27
    %v148 = vld [vmem:[%s147] ss:$30 sm:$0x3]
    %v149 = vsub.f32 %v146, %v148
    %v150 = vmul.f32 %v149, %v149
    %v151 = vadd.f32 %v144, %v150
    %s152 = scalar_lea.vmem %s0, 28
    %v153 = vld [vmem:[%s152] ss:$30 sm:$0x3]
    %s154 = scalar_lea.vmem %s1, 28
    %v155 = vld [vmem:[%s154] ss:$30 sm:$0x3]
    %v156 = vsub.f32 %v153, %v155
    %v157 = vmul.f32 %v156, %v156
    %v158 = vadd.f32 %v151, %v157
    %s159 = scalar_lea.vmem %s0, 29
    %v160 = vld [vmem:[%s159] ss:$30 sm:$0x3]
    %s161 = scalar_lea.vmem %s1, 29
    %v162 = vld [vmem:[%s161] ss:$30 sm:$0x3]
    %v163 = vsub.f32 %v160, %v162
    %v164 = vmul.f32 %v163, %v163
    %v165 = vadd.f32 %v158, %v164
    %v166 = vsel %vm15, %v26, 0.0
    %v167 = vmul.f32 %v166, 0.5
    %v168 = vsel %vm14, %v165, 0.0
    %v169 = vadd.f32 %v167, %v168
    %v170 = vld [vmem:[%s1] ss:$30 sm:$0x3]
    %v171 = vmul.f32 %v170, 0.14285715
    %s172 = scalar_lea.vmem %s1, 2
    %v173 = vld [vmem:[%s172] ss:$30 sm:$0x3]
    %v174 = vmul.f32 %v173, 0.5
    %v175 = vsub.f32 %v171, %v174
    %s176 = scalar_lea.vmem %s1, 1
    %v177 = vld [vmem:[%s176] ss:$30 sm:$0x3]
    %v178 = vmul.f32 %v177, 0.14285715
    %s179 = scalar_lea.vmem %s1, 3
    %v180 = vld [vmem:[%s179] ss:$30 sm:$0x3]
    %v181 = vmul.f32 %v180, 0.5
    %v182 = vsub.f32 %v178, %v181
    %v183 = vadd.f32 %v171, %v174
    %v184 = vadd.f32 %v178, %v181
    %v185 = vsub.f32 %v183, %v175
    %v186 = vsub.f32 %v184, %v182
    %v187 = vmul.f32 %v185, %v186
    %v188 = vld [vmem:[%s0] ss:$30 sm:$0x3]
    %v189 = vmul.f32 %v188, 0.14285715
    %s190 = scalar_lea.vmem %s0, 2
    %v191 = vld [vmem:[%s190] ss:$30 sm:$0x3]
    %v192 = vmul.f32 %v191, 0.5
    %v193 = vsub.f32 %v189, %v192
    %s194 = scalar_lea.vmem %s0, 1
    %v195 = vld [vmem:[%s194] ss:$30 sm:$0x3]
    %v196 = vmul.f32 %v195, 0.14285715
    %s197 = scalar_lea.vmem %s0, 3
    %v198 = vld [vmem:[%s197] ss:$30 sm:$0x3]
    %v199 = vmul.f32 %v198, 0.5
    %v200 = vsub.f32 %v196, %v199
    %v201 = vadd.f32 %v189, %v192
    %v202 = vadd.f32 %v196, %v199
    %v203 = vmin.f32 %v201, %v183
    %v204 = vmax.f32 %v193, %v175
    %v205 = vsub.f32 %v203, %v204
    %v206 = vmax.f32 %v205, 0.0
    %v207 = vmin.f32 %v202, %v184
    %v208 = vmax.f32 %v200, %v182
    %v209 = vsub.f32 %v207, %v208
    %v210 = vmax.f32 %v209, 0.0
    %v211 = vmul.f32 %v206, %v210
    %v212 = vsub.f32 %v201, %v193
    %v213 = vsub.f32 %v202, %v200
    %v214 = vmul.f32 %v212, %v213
    %v215 = vadd.f32 %v214, %v187
    %v216 = vsub.f32 %v215, %v211
    %v217 = vadd.f32 %v216, 1e-12
    %v218 = vrcp.pop %v217
    %v219 = vmul.f32 %v217, %v218
    %v220 = vsub.f32 2.0, %v219
    %v221 = vmul.f32 %v218, %v220
    %v222 = vmul.f32 %v211, %v221
    %v223 = vsub.f32 %v188, %v170
    %v224 = vmul.f32 %v223, %v223
    %v225 = vsub.f32 %v195, %v177
    %v226 = vmul.f32 %v225, %v225
    %v227 = vadd.f32 %v224, %v226
    %v228 = vrsqrt.pop %v191
    %v229 = vmul.f32 %v228, %v191
    %v230 = vmul.f32 %v229, %v228
    %v231 = vmul.f32 0.5, %v230
    %v232 = vsub.f32 1.5, %v231
    %v233 = vmul.f32 %v228, %v232
    %v234 = vmul.f32 %v191, %v233
    %vm235 = vcmp.eq.f32.partialorder %v191, inf
    %v236 = vsel %vm235, %v191, %v234
    %vm237 = vcmp.eq.f32.partialorder %v191, 0.0
    %v238 = vand.u32 %v191, 2147483648
    %v239 = vsel %vm237, %v238, %v236
    %v240 = vrsqrt.pop %v173
    %v241 = vmul.f32 %v240, %v173
    %v242 = vmul.f32 %v241, %v240
    %v243 = vmul.f32 0.5, %v242
    %v244 = vsub.f32 1.5, %v243
    %v245 = vmul.f32 %v240, %v244
    %v246 = vmul.f32 %v173, %v245
    %vm247 = vcmp.eq.f32.partialorder %v173, inf
    %v248 = vsel %vm247, %v173, %v246
    %vm249 = vcmp.eq.f32.partialorder %v173, 0.0
    %v250 = vand.u32 %v173, 2147483648
    %v251 = vsel %vm249, %v250, %v248
    %v252 = vsub.f32 %v239, %v251
    %v253 = vmul.f32 %v252, %v252
    %v254 = vrsqrt.pop %v198
    %v255 = vmul.f32 %v254, %v198
    %v256 = vmul.f32 %v255, %v254
    %v257 = vmul.f32 0.5, %v256
    %v258 = vsub.f32 1.5, %v257
    %v259 = vmul.f32 %v254, %v258
    %v260 = vmul.f32 %v198, %v259
    %vm261 = vcmp.eq.f32.partialorder %v198, inf
    %v262 = vsel %vm261, %v198, %v260
    %vm263 = vcmp.eq.f32.partialorder %v198, 0.0
    %v264 = vand.u32 %v198, 2147483648
    %v265 = vsel %vm263, %v264, %v262
    %v266 = vrsqrt.pop %v180
    %v267 = vmul.f32 %v266, %v180
    %v268 = vmul.f32 %v267, %v266
    %v269 = vmul.f32 0.5, %v268
    %v270 = vsub.f32 1.5, %v269
    %v271 = vmul.f32 %v266, %v270
    %v272 = vmul.f32 %v180, %v271
    %vm273 = vcmp.eq.f32.partialorder %v180, inf
    %v274 = vsel %vm273, %v180, %v272
    %vm275 = vcmp.eq.f32.partialorder %v180, 0.0
    %v276 = vand.u32 %v180, 2147483648
    %v277 = vsel %vm275, %v276, %v274
    %v278 = vsub.f32 %v265, %v277
    %v279 = vmul.f32 %v278, %v278
    %v280 = vadd.f32 %v253, %v279
    %v281 = vadd.f32 %v227, %v280
    %v282 = vmul.f32 %v281, 5.0
    %s283 = scalar_lea.vmem %s0, 5
    %v284 = vld [vmem:[%s283] ss:$30 sm:$0x3]
    %v285 = vmul.f32 %v284, 0.14285715
    %s286 = scalar_lea.vmem %s0, 7
    %v287 = vld [vmem:[%s286] ss:$30 sm:$0x3]
    %v288 = vmul.f32 %v287, 0.5
    %v289 = vsub.f32 %v285, %v288
    %s290 = scalar_lea.vmem %s0, 6
    %v291 = vld [vmem:[%s290] ss:$30 sm:$0x3]
    %v292 = vmul.f32 %v291, 0.14285715
    %s293 = scalar_lea.vmem %s0, 8
    %v294 = vld [vmem:[%s293] ss:$30 sm:$0x3]
    %v295 = vmul.f32 %v294, 0.5
    %v296 = vsub.f32 %v292, %v295
    %v297 = vadd.f32 %v285, %v288
    %v298 = vadd.f32 %v292, %v295
    %v299 = vmin.f32 %v297, %v183
    %v300 = vmax.f32 %v289, %v175
    %v301 = vsub.f32 %v299, %v300
    %v302 = vmax.f32 %v301, 0.0
    %v303 = vmin.f32 %v298, %v184
    %v304 = vmax.f32 %v296, %v182
    %v305 = vsub.f32 %v303, %v304
    %v306 = vmax.f32 %v305, 0.0
    %v307 = vmul.f32 %v302, %v306
    %v308 = vsub.f32 %v297, %v289
    %v309 = vsub.f32 %v298, %v296
    %v310 = vmul.f32 %v308, %v309
    %v311 = vadd.f32 %v310, %v187
    %v312 = vsub.f32 %v311, %v307
    %v313 = vadd.f32 %v312, 1e-12
    %v314 = vrcp.pop %v313
    %v315 = vmul.f32 %v313, %v314
    %v316 = vsub.f32 2.0, %v315
    %v317 = vmul.f32 %v314, %v316
    %v318 = vmul.f32 %v307, %v317
    %s319 = scalar_lea.vmem %s1, 5
    %v320 = vld [vmem:[%s319] ss:$30 sm:$0x3]
    %v321 = vsub.f32 %v284, %v320
    %v322 = vmul.f32 %v321, %v321
    %s323 = scalar_lea.vmem %s1, 6
    %v324 = vld [vmem:[%s323] ss:$30 sm:$0x3]
    %v325 = vsub.f32 %v291, %v324
    %v326 = vmul.f32 %v325, %v325
    %v327 = vadd.f32 %v322, %v326
    %v328 = vrsqrt.pop %v287
    %v329 = vmul.f32 %v328, %v287
    %v330 = vmul.f32 %v329, %v328
    %v331 = vmul.f32 0.5, %v330
    %v332 = vsub.f32 1.5, %v331
    %v333 = vmul.f32 %v328, %v332
    %v334 = vmul.f32 %v287, %v333
    %vm335 = vcmp.eq.f32.partialorder %v287, inf
    %v336 = vsel %vm335, %v287, %v334
    %vm337 = vcmp.eq.f32.partialorder %v287, 0.0
    %v338 = vand.u32 %v287, 2147483648
    %v339 = vsel %vm337, %v338, %v336
    %s340 = scalar_lea.vmem %s1, 7
    %v341 = vld [vmem:[%s340] ss:$30 sm:$0x3]
    %v342 = vrsqrt.pop %v341
    %v343 = vmul.f32 %v342, %v341
    %v344 = vmul.f32 %v343, %v342
    %v345 = vmul.f32 0.5, %v344
    %v346 = vsub.f32 1.5, %v345
    %v347 = vmul.f32 %v342, %v346
    %v348 = vmul.f32 %v341, %v347
    %vm349 = vcmp.eq.f32.partialorder %v341, inf
    %v350 = vsel %vm349, %v341, %v348
    %vm351 = vcmp.eq.f32.partialorder %v341, 0.0
    %v352 = vand.u32 %v341, 2147483648
    %v353 = vsel %vm351, %v352, %v350
    %v354 = vsub.f32 %v339, %v353
    %v355 = vmul.f32 %v354, %v354
    %v356 = vrsqrt.pop %v294
    %v357 = vmul.f32 %v356, %v294
    %v358 = vmul.f32 %v357, %v356
    %v359 = vmul.f32 0.5, %v358
    %v360 = vsub.f32 1.5, %v359
    %v361 = vmul.f32 %v356, %v360
    %v362 = vmul.f32 %v294, %v361
    %vm363 = vcmp.eq.f32.partialorder %v294, inf
    %v364 = vsel %vm363, %v294, %v362
    %vm365 = vcmp.eq.f32.partialorder %v294, 0.0
    %v366 = vand.u32 %v294, 2147483648
    %v367 = vsel %vm365, %v366, %v364
    %s368 = scalar_lea.vmem %s1, 8
    %v369 = vld [vmem:[%s368] ss:$30 sm:$0x3]
    %v370 = vrsqrt.pop %v369
    %v371 = vmul.f32 %v370, %v369
    %v372 = vmul.f32 %v371, %v370
    %v373 = vmul.f32 0.5, %v372
    %v374 = vsub.f32 1.5, %v373
    %v375 = vmul.f32 %v370, %v374
    %v376 = vmul.f32 %v369, %v375
    %vm377 = vcmp.eq.f32.partialorder %v369, inf
    %v378 = vsel %vm377, %v369, %v376
    %vm379 = vcmp.eq.f32.partialorder %v369, 0.0
    %v380 = vand.u32 %v369, 2147483648
    %v381 = vsel %vm379, %v380, %v378
    %v382 = vsub.f32 %v367, %v381
    %v383 = vmul.f32 %v382, %v382
    %v384 = vadd.f32 %v355, %v383
    %v385 = vadd.f32 %v327, %v384
    %v386 = vmul.f32 %v385, 5.0
    %v387 = vmax.f32 %v222, %v318
    %vm388 = vcmp.ge.f32.partialorder %v222, %v387
    %vm389 = vmand %vm14, %vm388
    %v390 = vsub.f32 %v17, %v387
    %v391 = vmul.f32 %v390, %v390
    %v392 = vadd.f32 %v282, %v391
    %v393 = vsel %vm389, %v392, 0.0
    %v394 = vadd.f32 %v169, %v393
    %vm395 = vcmp.ge.f32.partialorder %v318, %v387
    %vm396 = vmxor %vm388, 1
    %vm397 = vmand %vm395, %vm396
    %vm398 = vmand %vm14, %vm397
    %v399 = vsub.f32 %v21, %v387
    %v400 = vmul.f32 %v399, %v399
    %v401 = vadd.f32 %v386, %v400
    %v402 = vsel %vm398, %v401, 0.0
    %v403 = vadd.f32 %v394, %v402
    %vm404 = vcmask 394240
    %405 = vst.msk [vmem:[#allocation2] sm:$0x3] %vm404, %v403
    // Predicated region
    $region10: #{tpu_custom_call.1} parent=1 // pred_check
      _
    $region11: #{tpu_custom_call.1} parent=1 // pred_check_branch
      %407 = sbr.rel (0) target = $region13
    $region12: #{tpu_custom_call.1} parent=1 // pred_region
      %409 = vsyncadd [#allocation3], 0
      %s411 = sshll.u32 [#allocation2], 4
      %s412 = int_to_ptr.vmem [resolvable:$true] %s411
      %s413 = sshll.u32 %s2, 4
      %s414 = int_to_ptr.hbm [resolvable:$true] %s413
      %416 = dma.vmem_to_hbm [thread:$0]  %s412, 32, %s414, [#allocation3]
    $region13: #{tpu_custom_call.1} parent=1 // pred_fallthru
      _
    // Predicated region
    $region14: #{tpu_custom_call.1} parent=1 // pred_check
      _
    $region15: #{tpu_custom_call.1} parent=1 // pred_check_branch
      %418 = sbr.rel (0) target = $region17
    $region16: #{tpu_custom_call.1} parent=1 // pred_region
      %420 = dma.done [#allocation3], 32
    $region17: #{tpu_custom_call.1} parent=1 // pred_fallthru
      _
    %421 = vsyncpa [#allocation3], 1

</llo_original>
